<compile_context>
chip_gen: v7x
topology: tpu7x:2x2x1
jax: 0.10.0
libtpu: 0.0.40
codegen_flags: <defaults>
</compile_context>

<pallas_src>
import functools

import jax
import jax.numpy as jnp
from jax.experimental import pallas as pl
from jax.experimental.pallas import tpu as pltpu

INPUT_SIZE = 6      # 5 sensor readings + 1 action
HIDDEN_SIZE = 32
OUTPUT_SIZE = 1

IN_PAD = 8          # input features padded to one full sublane group
LANES = 128         # batch is laid out on lanes -> tiles are multiples of 128


def _round_up(x, m):
    return ((x + m - 1) // m) * m


def _ff_kernel(x_ref, w1t_ref, b1_ref, w2_ref, b2_ref, o_ref):
    # x_ref  : (8, TB)   bf16   features on sublanes (zero-padded 6 -> 8),
    #                           batch on lanes
    # w1t_ref: (32, 8)   bf16   fc1 weight, transposed (hidden, feat_pad)
    # b1_ref : (32, 1)   f32    fc1 bias (broadcast over lanes)
    # w2_ref : (32, 1)   f32    fc2 weight as a column
    # b2_ref : (1, 1)    f32    fc2 bias (SMEM scalar)
    # o_ref  : (1, TB)   f32    lane-dense output
    x = x_ref[...]
    # fc1 on the MXU: (32, 8) x (8, TB) -> (32, TB), bf16 in / f32 accumulate.
    h = jnp.dot(w1t_ref[...], x, preferred_element_type=jnp.float32)
    # bias + ReLU on the VPU in f32 (v5e has no bf16 VPU path).
    h = jnp.maximum(h + b1_ref[...], 0.0)
    # fc2: N=1 matmul would waste the MXU -> VPU multiply + sublane reduce.
    # Zero-padded feature sublanes already contributed exactly 0 in fc1.
    y = jnp.sum(h * w2_ref[...], axis=0, keepdims=True)           # (1, TB)
    y = y + b2_ref[0, 0]
    o_ref[...] = jax.nn.sigmoid(y).astype(o_ref.dtype)


@functools.partial(jax.jit, static_argnames=("tb",))
def action_conditioned_ff(x, w1, b1, w2, b2, *, tb=32768):
    """Forward pass.

    x : (B, 6) f32
    w1: (6, 32) f32, b1: (32,) or (1, 32) f32
    w2: (32, 1) f32, b2: scalar / (1,) / (1, 1) f32
    returns (B, 1) f32
    """
    B, fin = x.shape
    assert fin == INPUT_SIZE, f"expected {INPUT_SIZE} input features, got {fin}"
    assert w1.shape == (INPUT_SIZE, HIDDEN_SIZE)
    assert w2.shape == (HIDDEN_SIZE, OUTPUT_SIZE)
    b1_col = jnp.asarray(b1, jnp.float32).reshape(HIDDEN_SIZE, 1)
    w2_col = jnp.asarray(w2, jnp.float32).reshape(HIDDEN_SIZE, 1)
    b2_p = jnp.asarray(b2, jnp.float32).reshape(1, 1)

    # --- batch tiling (batch lives on lanes) ------------------------------
    b_lanes = _round_up(B, LANES)
    n_steps = max(1, pl.cdiv(b_lanes, tb))
    if n_steps == 1 and b_lanes >= 2 * LANES:
        n_steps = 2                      # keep both v7x TensorCores busy
    tb_eff = _round_up(pl.cdiv(b_lanes, n_steps), LANES)
    b_pad = _round_up(b_lanes, tb_eff)
    grid = (b_pad // tb_eff,)

    # --- lay out inputs/params once ---------------------------------------
    # Single fused pad+cast+transpose pass over x (one read, one write).
    x_p = jnp.pad(x.astype(jnp.bfloat16),
                  ((0, b_pad - B), (0, IN_PAD - INPUT_SIZE))).T    # (8, b_pad)

    w1t_p = jnp.pad(jnp.asarray(w1, jnp.float32).T.astype(jnp.bfloat16),
                    ((0, 0), (0, IN_PAD - INPUT_SIZE)))            # (32, 8)

    out = pl.pallas_call(
        _ff_kernel,
        out_shape=jax.ShapeDtypeStruct((1, b_pad), jnp.float32),
        grid=grid,
        in_specs=[
            # x: tiled along the lane (batch) axis
            pl.BlockSpec((IN_PAD, tb_eff), lambda i: (0, i)),
            # weights/biases: constant block index -> stay VMEM-resident
            pl.BlockSpec((HIDDEN_SIZE, IN_PAD), lambda i: (0, 0)),
            pl.BlockSpec((HIDDEN_SIZE, 1), lambda i: (0, 0)),
            pl.BlockSpec((HIDDEN_SIZE, 1), lambda i: (0, 0)),
            # b2: scalar in SMEM
            pl.BlockSpec(memory_space=pltpu.MemorySpace.SMEM),
        ],
        out_specs=pl.BlockSpec((1, tb_eff), lambda i: (0, i)),
        compiler_params=pltpu.CompilerParams(
            dimension_semantics=("parallel",),
            vmem_limit_bytes=32 * 1024 * 1024),
    )(x_p, w1t_p, b1_col, w2_col, b2_p)

    return out[0, :B].reshape(B, OUTPUT_SIZE)


# ------------------------- references & params -------------------------------

def _reference_f32(x, w1, b1, w2, b2):
    h = jnp.maximum(x @ w1 + jnp.asarray(b1).reshape(1, -1), 0.0)
    return jax.nn.sigmoid(h @ w2 + jnp.asarray(b2).reshape(1, 1))


def _reference_bf16_matched(x, w1, b1, w2, b2):
    # Same bf16 cast on the fc1 operands as the kernel (f32 accumulate).
    h = jnp.dot(x.astype(jnp.bfloat16), w1.astype(jnp.bfloat16),
                preferred_element_type=jnp.float32)
    h = jnp.maximum(h + jnp.asarray(b1).reshape(1, -1), 0.0)
    y = h @ jnp.asarray(w2, jnp.float32) + jnp.asarray(b2).reshape(1, 1)
    return jax.nn.sigmoid(y)


def init_params(key):
    """Deterministic synthetic parameters (torch.nn.Linear-style uniform init)."""
    k1, k2, k3, k4 = jax.random.split(key, 4)
    bound1 = 1.0 / jnp.sqrt(INPUT_SIZE)
    bound2 = 1.0 / jnp.sqrt(HIDDEN_SIZE)
    w1 = jax.random.uniform(k1, (INPUT_SIZE, HIDDEN_SIZE), jnp.float32,
                            -bound1, bound1)
    b1 = jax.random.uniform(k2, (HIDDEN_SIZE,), jnp.float32, -bound1, bound1)
    w2 = jax.random.uniform(k3, (HIDDEN_SIZE, OUTPUT_SIZE), jnp.float32,
                            -bound2, bound2)
    b2 = jax.random.uniform(k4, (1,), jnp.float32, -bound2, bound2)
    return w1, b1, w2, b2


if __name__ == "__main__":
    key = jax.random.PRNGKey(0)
    kx, kp = jax.random.split(key)

    # Small batch that still exercises the multi-tile path + ragged padding:
    # B=300 -> 384 lanes -> forced to 2 grid steps of 256 lanes (512 padded),
    # last 212 padded lanes are sliced off after the call.
    B = 300
    x = jax.random.normal(kx, (B, INPUT_SIZE), dtype=jnp.float32)
    w1, b1, w2, b2 = init_params(kp)

    out = jax.block_until_ready(action_conditioned_ff(x, w1, b1, w2, b2))
    assert out.shape == (B, OUTPUT_SIZE)

    # Tight check against a reference using the same bf16 fc1 operands.
    ref_matched = _reference_bf16_matched(x, w1, b1, w2, b2)
    assert jnp.allclose(out, ref_matched, atol=1e-3, rtol=1e-3), \
        "mismatch vs bf16-matched JAX reference"

    # Loose check against the pure-f32 reference (bf16 quantization error only).
    ref_f32 = _reference_f32(x, w1, b1, w2, b2)
    assert jnp.allclose(out, ref_f32, atol=3e-2, rtol=3e-2), \
        "mismatch vs f32 JAX reference"

    print("KERNEL_OK")
</pallas_src>

<mosaic_0001>
module attributes {stable_mosaic.version = 11 : i64} {
  func.func @_ff_kernel(%arg0: i32, %arg1: memref<8x256xbf16, #tpu.memory_space<vmem>>, %arg2: memref<32x8xbf16, #tpu.memory_space<vmem>>, %arg3: memref<32x1xf32, #tpu.memory_space<vmem>>, %arg4: memref<32x1xf32, #tpu.memory_space<vmem>>, %arg5: memref<1x1xf32, #tpu.memory_space<smem>>, %arg6: memref<1x256xf32, #tpu.memory_space<vmem>>) attributes {dimension_semantics = [#tpu.dimension_semantics<parallel>], iteration_bounds = array<i64: 2>, scalar_prefetch = 0 : i64, scratch_operands = 0 : i64, tpu.core_type = #tpu.core_type<tc>, window_params = [{transform_indices = @transform_0, window_bounds = array<i64: 8, 256>}, {pipeline_mode = #tpu.pipeline_mode<synchronous>, transform_indices = @transform_1, window_bounds = array<i64: 32, 8>}, {pipeline_mode = #tpu.pipeline_mode<synchronous>, transform_indices = @transform_2, window_bounds = array<i64: 32, 1>}, {pipeline_mode = #tpu.pipeline_mode<synchronous>, transform_indices = @transform_3, window_bounds = array<i64: 32, 1>}, {transform_indices = @transform_4, window_bounds = array<i64: 1, 1>}, {transform_indices = @transform_5, window_bounds = array<i64: 1, 256>}]} {
    %c0 = arith.constant 0 : index
    %c0_0 = arith.constant 0 : index
    %0 = vector.load %arg1[%c0, %c0_0] : memref<8x256xbf16, #tpu.memory_space<vmem>>, vector<8x256xbf16>
    %c0_1 = arith.constant 0 : index
    %c0_2 = arith.constant 0 : index
    %1 = vector.load %arg2[%c0_1, %c0_2] : memref<32x8xbf16, #tpu.memory_space<vmem>>, vector<32x8xbf16>
    %cst = arith.constant dense<0.000000e+00> : vector<32x256xf32>
    %2 = tpu.matmul %1, %0, %cst {dimension_numbers = #tpu.dot_dimension_numbers<[1], [0], [0], [1], [0, 0, 1, 1], [], []>} : vector<32x8xbf16>, vector<8x256xbf16>, vector<32x256xf32> -> vector<32x256xf32>
    %c0_3 = arith.constant 0 : index
    %c0_4 = arith.constant 0 : index
    %3 = vector.load %arg3[%c0_3, %c0_4] : memref<32x1xf32, #tpu.memory_space<vmem>>, vector<32x1xf32>
    %4 = vector.broadcast %3 : vector<32x1xf32> to vector<32x256xf32>
    %5 = arith.addf %2, %4 : vector<32x256xf32>
    %cst_5 = arith.constant 0.000000e+00 : f32
    %6 = vector.broadcast %cst_5 : f32 to vector<32x256xf32>
    %7 = arith.maximumf %5, %6 : vector<32x256xf32>
    %c0_6 = arith.constant 0 : index
    %c0_7 = arith.constant 0 : index
    %8 = vector.load %arg4[%c0_6, %c0_7] : memref<32x1xf32, #tpu.memory_space<vmem>>, vector<32x1xf32>
    %9 = vector.broadcast %8 : vector<32x1xf32> to vector<32x256xf32>
    %10 = arith.mulf %7, %9 : vector<32x256xf32>
    %cst_8 = arith.constant dense<0.000000e+00> : vector<256xf32>
    %11 = vector.multi_reduction <add>, %10, %cst_8 [0] : vector<32x256xf32> to vector<256xf32>
    %12 = vector.shape_cast %11 : vector<256xf32> to vector<1x256xf32>
    %c0_9 = arith.constant 0 : index
    %c0_10 = arith.constant 0 : index
    %13 = memref.load %arg5[%c0_9, %c0_10] : memref<1x1xf32, #tpu.memory_space<smem>>
    %14 = vector.broadcast %13 : f32 to vector<1x256xf32>
    %15 = arith.addf %12, %14 : vector<1x256xf32>
    %16 = arith.negf %15 : vector<1x256xf32>
    %17 = math.exp %16 : vector<1x256xf32>
    %cst_11 = arith.constant 1.000000e+00 : f32
    %18 = vector.broadcast %cst_11 : f32 to vector<1x256xf32>
    %19 = arith.addf %18, %17 : vector<1x256xf32>
    %20 = arith.divf %18, %19 : vector<1x256xf32>
    %c0_12 = arith.constant 0 : index
    %c0_13 = arith.constant 0 : index
    %21 = vector.load %arg6[%c0_12, %c0_13] : memref<1x256xf32, #tpu.memory_space<vmem>>, vector<1x256xf32>
    tpu.vector_store %arg6[%c0_12, %c0_13], %20 {strides = array<i32>} : memref<1x256xf32, #tpu.memory_space<vmem>>, vector<1x256xf32>,
    return
  }
  func.func @transform_0(%arg0: i32) -> (i32, i32) {
    %c0_i32 = arith.constant 0 : i32
    %c0_i32_0 = arith.constant 0 : i32
    return %c0_i32, %arg0 : i32, i32
  }
  func.func @transform_1(%arg0: i32) -> (i32, i32) {
    %c0_i32 = arith.constant 0 : i32
    %c0_i32_0 = arith.constant 0 : i32
    %c0_i32_1 = arith.constant 0 : i32
    return %c0_i32, %c0_i32_0 : i32, i32
  }
  func.func @transform_2(%arg0: i32) -> (i32, i32) {
    %c0_i32 = arith.constant 0 : i32
    %c0_i32_0 = arith.constant 0 : i32
    %c0_i32_1 = arith.constant 0 : i32
    return %c0_i32, %c0_i32_0 : i32, i32
  }
  func.func @transform_3(%arg0: i32) -> (i32, i32) {
    %c0_i32 = arith.constant 0 : i32
    %c0_i32_0 = arith.constant 0 : i32
    %c0_i32_1 = arith.constant 0 : i32
    return %c0_i32, %c0_i32_0 : i32, i32
  }
  func.func @transform_4(%arg0: i32) -> (i32, i32) {
    %c0_i32 = arith.constant 0 : i32
    %c0_i32_0 = arith.constant 0 : i32
    %c0_i32_1 = arith.constant 0 : i32
    return %c0_i32, %c0_i32_0 : i32, i32
  }
  func.func @transform_5(%arg0: i32) -> (i32, i32) {
    %c0_i32 = arith.constant 0 : i32
    %c0_i32_0 = arith.constant 0 : i32
    return %c0_i32, %arg0 : i32, i32
  }
}

</mosaic_0001>

<llo_original>
// kernel: action_conditioned_ff.1
$region0: #{action_conditioned_ff.1}
  #allocation0 [shape = 'u32[]', space=smem, size = 0x4, offset = 0x4, fixed_abs, tag = 'smem constant byte address 0x4 - core index']
  #allocation1 [shape = 'u32[144,128]{1,0:T(1,128)}', space=vmem, size = 0x12000, scoped, tag = 'internal scratch']
  #allocation2 [shape = 'f32[1,1]{1,0:T(1,128)S(6)}', space=smem, size = 0x200, scoped, tag = 'scoped memory for action_conditioned_ff.1']
  %s0 = inlined_call_operand.vmem [shape: bf16[8,512], index: 0, kind: input, shape index: {}]
  %s1 = inlined_call_operand.vmem [shape: bf16[32,8], index: 1, kind: input, shape index: {}]
  %s2 = inlined_call_operand.vmem [shape: f32[32,1], index: 2, kind: input, shape index: {}]
  %s3 = inlined_call_operand.vmem [shape: f32[32,1], index: 3, kind: input, shape index: {}]
  %s4 = inlined_call_operand.<no memory space> [shape: f32[1,1], index: 4, kind: input, shape index: {}]
  %s5 = inlined_call_operand.vmem [shape: f32[1,512], index: 5, kind: output, shape index: {}]
  %s6 = sld [smem:[#allocation0]]
  $region53: #{action_conditioned_ff.1} parent=0
    _
  %s8 = ssub.s32 1, %s6
  %s9 = scalar_select 0, %s8, %s6
  %10 = sst [smem:[#allocation2]] %s4
  loop: start=0, step=1, limit=4
  $region2: #{action_conditioned_ff.1} parent=0 // loop_pre_header
    _
  $region3: #{action_conditioned_ff.1} parent=0 // loop_header
    %s12 = sphi 0, %s16
    %p13 = scmp.ge.s32.totalorder %s12, 4
    %s22 = sphi 0, %s24
    %s25 = sphi 0, %s22
    %s26 = sphi 0, %s25
    %s42 = sphi 0, %s26
    %s46 = sphi 0, %s46
    %s48 = sphi 0, %s46
    %s49 = sphi 0, %s48
    %s63 = sphi 0, %s49
    %s67 = sphi 0, %s67
    %s69 = sphi 0, %s67
    %s70 = sphi 0, %s69
    %s84 = sphi 0, %s70
    %s88 = sphi 0, %s88
    %s90 = sphi 0, %s88
    %s91 = sphi 0, %s90
    %s105 = sphi 0, %s91
    %s109 = sphi 0, %s109
    %s111 = sphi 0, %s109
    %s112 = sphi 0, %s111
    %s126 = sphi 0, %s112
    %s132 = sphi 0, %s134
    %s135 = sphi 0, %s132
    %s136 = sphi 0, %s135
    %s152 = sphi 0, %s136
  $region4: #{action_conditioned_ff.1} parent=0 // loop_header_branch
    %15 = sbr.rel (%p13) target = $region8
  $region5: #{action_conditioned_ff.1} parent=0 // loop_body
    %s17 = ssub.s32 %s12, 1
    %s18 = ssub.s32 %s12, 2
    %s19 = sadd.s32 %s12, 1
    %s20 = ssub.s32 %s12, %s19
    %p21 = scmp.eq.s32.totalorder %s20, 0
    %s23 = sadd.s32 %s22, 1
    %s24 = scalar_select %p21, %s22, %s23
    %p27 = pneg %p21
    %p28 = scmp.eq.s32.totalorder %s12, 1
    %p29 = por %p27, %p28
    %p30 = scmp.ne.s32.totalorder %s22, %s25
    %p31 = scmp.eq.s32.totalorder %s12, 0
    %p32 = por %p30, %p31
    %p33 = scmp.ne.s32.totalorder %s22, %s25
    %p34 = scmp.eq.s32.totalorder %s17, 1
    %p35 = por %p33, %p34
    %p36 = scmp.ne.s32.totalorder %s25, %s26
    %p37 = scmp.eq.s32.totalorder %s17, 0
    %p38 = por %p36, %p37
    %p39 = scmp.ne.s32.totalorder %s25, %s26
    %p40 = scmp.eq.s32.totalorder %s18, 1
    %p41 = por %p39, %p40
    %p43 = scmp.ne.s32.totalorder %s26, %s42
    %p44 = scmp.eq.s32.totalorder %s18, 0
    %p45 = por %p43, %p44
    %s47 = sadd.s32 %s46, 1
    %p50 = scmp.eq.s32.totalorder %s12, 1
    %p51 = scmp.ne.s32.totalorder %s46, %s48
    %p52 = scmp.eq.s32.totalorder %s12, 0
    %p53 = por %p51, %p52
    %p54 = scmp.ne.s32.totalorder %s46, %s48
    %p55 = scmp.eq.s32.totalorder %s17, 1
    %p56 = por %p54, %p55
    %p57 = scmp.ne.s32.totalorder %s48, %s49
    %p58 = scmp.eq.s32.totalorder %s17, 0
    %p59 = por %p57, %p58
    %p60 = scmp.ne.s32.totalorder %s48, %s49
    %p61 = scmp.eq.s32.totalorder %s18, 1
    %p62 = por %p60, %p61
    %p64 = scmp.ne.s32.totalorder %s49, %s63
    %p65 = scmp.eq.s32.totalorder %s18, 0
    %p66 = por %p64, %p65
    %s68 = sadd.s32 %s67, 1
    %p71 = scmp.eq.s32.totalorder %s12, 1
    %p72 = scmp.ne.s32.totalorder %s67, %s69
    %p73 = scmp.eq.s32.totalorder %s12, 0
    %p74 = por %p72, %p73
    %p75 = scmp.ne.s32.totalorder %s67, %s69
    %p76 = scmp.eq.s32.totalorder %s17, 1
    %p77 = por %p75, %p76
    %p78 = scmp.ne.s32.totalorder %s69, %s70
    %p79 = scmp.eq.s32.totalorder %s17, 0
    %p80 = por %p78, %p79
    %p81 = scmp.ne.s32.totalorder %s69, %s70
    %p82 = scmp.eq.s32.totalorder %s18, 1
    %p83 = por %p81, %p82
    %p85 = scmp.ne.s32.totalorder %s70, %s84
    %p86 = scmp.eq.s32.totalorder %s18, 0
    %p87 = por %p85, %p86
    %s89 = sadd.s32 %s88, 1
    %p92 = scmp.eq.s32.totalorder %s12, 1
    %p93 = scmp.ne.s32.totalorder %s88, %s90
    %p94 = scmp.eq.s32.totalorder %s12, 0
    %p95 = por %p93, %p94
    %p96 = scmp.ne.s32.totalorder %s88, %s90
    %p97 = scmp.eq.s32.totalorder %s17, 1
    %p98 = por %p96, %p97
    %p99 = scmp.ne.s32.totalorder %s90, %s91
    %p100 = scmp.eq.s32.totalorder %s17, 0
    %p101 = por %p99, %p100
    %p102 = scmp.ne.s32.totalorder %s90, %s91
    %p103 = scmp.eq.s32.totalorder %s18, 1
    %p104 = por %p102, %p103
    %p106 = scmp.ne.s32.totalorder %s91, %s105
    %p107 = scmp.eq.s32.totalorder %s18, 0
    %p108 = por %p106, %p107
    %s110 = sadd.s32 %s109, 1
    %p113 = scmp.eq.s32.totalorder %s12, 1
    %p114 = scmp.ne.s32.totalorder %s109, %s111
    %p115 = scmp.eq.s32.totalorder %s12, 0
    %p116 = por %p114, %p115
    %p117 = scmp.ne.s32.totalorder %s109, %s111
    %p118 = scmp.eq.s32.totalorder %s17, 1
    %p119 = por %p117, %p118
    %p120 = scmp.ne.s32.totalorder %s111, %s112
    %p121 = scmp.eq.s32.totalorder %s17, 0
    %p122 = por %p120, %p121
    %p123 = scmp.ne.s32.totalorder %s111, %s112
    %p124 = scmp.eq.s32.totalorder %s18, 1
    %p125 = por %p123, %p124
    %p127 = scmp.ne.s32.totalorder %s112, %s126
    %p128 = scmp.eq.s32.totalorder %s18, 0
    %p129 = por %p127, %p128
    %s130 = ssub.s32 %s12, %s19
    %p131 = scmp.eq.s32.totalorder %s130, 0
    %s133 = sadd.s32 %s132, 1
    %s134 = scalar_select %p131, %s132, %s133
    %p137 = pneg %p131
    %p138 = scmp.eq.s32.totalorder %s12, 1
    %p139 = por %p137, %p138
    %p140 = scmp.ne.s32.totalorder %s132, %s135
    %p141 = scmp.eq.s32.totalorder %s12, 0
    %p142 = por %p140, %p141
    %p143 = scmp.ne.s32.totalorder %s132, %s135
    %p144 = scmp.eq.s32.totalorder %s17, 1
    %p145 = por %p143, %p144
    %p146 = scmp.ne.s32.totalorder %s135, %s136
    %p147 = scmp.eq.s32.totalorder %s17, 0
    %p148 = por %p146, %p147
    %p149 = scmp.ne.s32.totalorder %s135, %s136
    %p150 = scmp.eq.s32.totalorder %s18, 1
    %p151 = por %p149, %p150
    %p153 = scmp.ne.s32.totalorder %s136, %s152
    %p154 = scmp.eq.s32.totalorder %s18, 0
    %p155 = por %p153, %p154
    %p156 = scmp.le.s32.totalorder 1, %s12
    %p157 = scmp.lt.s32.totalorder %s12, 3
    %p158 = pnand %p156, %p157
    %p159 = pneg %p158
    // Predicated region
    $region9: #{action_conditioned_ff.1} parent=5 // pred_check
      _
    $region10: #{action_conditioned_ff.1} parent=5 // pred_check_branch
      %161 = sbr.rel (%p158) target = $region12
    $region11: #{action_conditioned_ff.1} parent=5 // pred_region
      %s162 = ssub.s32 %s12, 1
      // Predicated region
      $region13: #{action_conditioned_ff.1} parent=11 // pred_check
        %p163 = pneg %p59
      $region14: #{action_conditioned_ff.1} parent=11 // pred_check_branch
        %165 = sbr.rel (%p163) target = $region16
      $region15: #{action_conditioned_ff.1} parent=11 // pred_region
        _
      $region16: #{action_conditioned_ff.1} parent=11 // pred_fallthru
        _
      // Predicated region
      $region17: #{action_conditioned_ff.1} parent=11 // pred_check
        %p166 = pneg %p80
      $region18: #{action_conditioned_ff.1} parent=11 // pred_check_branch
        %168 = sbr.rel (%p166) target = $region20
      $region19: #{action_conditioned_ff.1} parent=11 // pred_region
        _
      $region20: #{action_conditioned_ff.1} parent=11 // pred_fallthru
        _
      // Predicated region
      $region21: #{action_conditioned_ff.1} parent=11 // pred_check
        %p169 = pneg %p101
      $region22: #{action_conditioned_ff.1} parent=11 // pred_check_branch
        %171 = sbr.rel (%p169) target = $region24
      $region23: #{action_conditioned_ff.1} parent=11 // pred_region
        _
      $region24: #{action_conditioned_ff.1} parent=11 // pred_fallthru
        _
      // Predicated region
      $region25: #{action_conditioned_ff.1} parent=11 // pred_check
        %p172 = pneg %p122
      $region26: #{action_conditioned_ff.1} parent=11 // pred_check_branch
        %174 = sbr.rel (%p172) target = $region28
      $region27: #{action_conditioned_ff.1} parent=11 // pred_region
        _
      $region28: #{action_conditioned_ff.1} parent=11 // pred_fallthru
        _
    $region12: #{action_conditioned_ff.1} parent=5 // pred_fallthru
      _
    %p175 = scmp.lt.s32.totalorder %s12, 2
    // Predicated region
    $region29: #{action_conditioned_ff.1} parent=5 // pred_check
      %p176 = pneg %p175
    $region30: #{action_conditioned_ff.1} parent=5 // pred_check_branch
      %178 = sbr.rel (%p176) target = $region32
    $region31: #{action_conditioned_ff.1} parent=5 // pred_region
      // Predicated region
      $region33: #{action_conditioned_ff.1} parent=31 // pred_check
        %p179 = pneg %p32
      $region34: #{action_conditioned_ff.1} parent=31 // pred_check_branch
        %181 = sbr.rel (%p179) target = $region36
      $region35: #{action_conditioned_ff.1} parent=31 // pred_region
        %s182 = smul.u32 2, %s12
        %p183 = scmp.lt.s32.totalorder %s182, 3
        %s184 = scalar_select %p183, %s182, 3
        %s185 = smul.addr %s184, 4
        %s186 = scalar_lea.vmem %s0, %s185
        %s187 = smul.u32 2, %s12
      $region36: #{action_conditioned_ff.1} parent=31 // pred_fallthru
        _
    $region32: #{action_conditioned_ff.1} parent=5 // pred_fallthru
      _
    %p188 = scmp.le.s32.totalorder 1, %s12
    %p189 = scmp.lt.s32.totalorder %s12, 3
    %p190 = pnand %p188, %p189
    %p191 = pneg %p190
    // Predicated region
    $region37: #{action_conditioned_ff.1} parent=5 // pred_check
      _
    $region38: #{action_conditioned_ff.1} parent=5 // pred_check_branch
      %193 = sbr.rel (%p190) target = $region40
    $region39: #{action_conditioned_ff.1} parent=5 // pred_region
      %s194 = ssub.s32 %s12, 1
      %s195 = smul.u32 2, %s17
      %p196 = scmp.lt.s32.totalorder %s195, 3
      %s197 = scalar_select %p196, %s195, 3
      %s198 = smul.addr %s197, 4
      %s199 = scalar_lea.vmem %s0, %s198
      %p200 = pneg %p38
      %p201 = pneg %p35
      %p202 = pneg %p59
      %p203 = pneg %p56
      %p204 = pneg %p80
      %p205 = pneg %p77
      %p206 = pneg %p101
      %p207 = pneg %p98
      %p208 = pneg %p122
      %p209 = pneg %p119
      %p210 = pneg %p148
      %p211 = pneg %p145
      %s212 = smul.u32 2, %s17
      %p213 = scmp.lt.s32.totalorder %s212, 3
      %s214 = scalar_select %p213, %s212, 3
      %s215 = scalar_lea.vmem %s5, %s214
      %s216 = smul.u32 2, %s17
      %p217 = scmp.lt.s32.totalorder %s216, 3
      %s218 = scalar_select %p217, %s216, 3
      %s219 = smul.addr %s218, 4
      %s220 = scalar_lea.vmem %s0, %s219
      %s221 = smul.u32 2, %s17
      %s222 = smul.u32 2, %s17
      %p223 = scmp.lt.s32.totalorder %s222, 3
      %s224 = scalar_select %p223, %s222, 3
      %s225 = scalar_lea.vmem %s5, %s224
      %s226 = smul.u32 2, %s17
      %v228 = vld [vmem:[%s220] sm:$0xff]
      %v229 = vld [vmem:[%s1] sm:$0xf]
      %v230 = vld [vmem:[%s1 + $0x4] sm:$0xf]
      %v231 = vld [vmem:[%s1 + $0x8] sm:$0xf]
      %v232 = vld [vmem:[%s1 + $0xc] sm:$0xf]
      %v233 = vld [vmem:[%s2] sm:$0xff]
      %v234 = vld [vmem:[%s2 + $0x8] sm:$0xff]
      %v235 = vld [vmem:[%s2 + $0x10] sm:$0xff]
      %v236 = vld [vmem:[%s2 + $0x18] sm:$0xff]
      %238 = vset.pattern.permute.xlu0 0
      %239 = vperm.xlu0 %238, %v233
      %v240 = vpop.permute.xlu0 %239
      %243 = vset.pattern.permute.xlu0 0
      %244 = vperm.xlu0 %243, %v234
      %v245 = vpop.permute.xlu0 %244
      %248 = vset.pattern.permute.xlu0 0
      %249 = vperm.xlu0 %248, %v235
      %v250 = vpop.permute.xlu0 %249
      %253 = vset.pattern.permute.xlu0 0
      %254 = vperm.xlu0 %253, %v236
      %v255 = vpop.permute.xlu0 %254
      %v261 = vunpack.c.l.b16 %v229
      %v262 = vunpack.c.l.b16 %v230
      %v263 = vunpack.c.l.b16 %v231
      %v264 = vunpack.c.l.b16 %v232
      %v265 = vpack.c.b16 %v262, %v261
      %v266 = vpack.c.b16 %v264, %v263
      %v268 = vunpack.c.l.b16 %v228
      %v269 = vunpack.c.h.b16 %v228
      %v270 = vpack.c.b16 %v268, %v268
      %v271 = vpack.c.b16 %v269, %v269
      %vm272 = vcmask 64512
      %v274 = vsel %vm272, %v265, 0
      %v277 = vsel %vm272, %v266, 0
      %vm279 = vcmask 1043456
      %v281 = vsel %vm279, %v270, 0
      %v284 = vsel %vm279, %v271, 0
      %286 = vmatprep.subr.bf16.mxu0 %v284
      %287 = vmatpush1.bf16.msra.mxu0 %v281
      %288 = vmatprep.subr.bf16.mxu0 0
      %289 = vmatpush1.bf16.msra.mxu0 0
      %290 = vmatprep.subr.bf16.mxu0 0
      %291 = vmatpush1.bf16.msra.mxu0 0
      %292 = vmatprep.subr.bf16.mxu0 0
      %293 = vmatpush1.bf16.msra.mxu0 0
      %294 = vmatprep.subr.bf16.mxu0 0
      %295 = vmatpush1.bf16.msra.mxu0 0
      %296 = vmatprep.subr.bf16.mxu0 0
      %297 = vmatpush1.bf16.msra.mxu0 0
      %298 = vmatprep.subr.bf16.mxu0 0
      %299 = vmatpush1.bf16.msra.mxu0 0
      %300 = vmatprep.subr.bf16.mxu0 0
      %301 = vmatpush1.bf16.msra.mxu0 0
      %302 = vmatprep.subr.bf16.mxu0 0
      %303 = vmatpush1.bf16.msra.mxu0 0
      %304 = vmatprep.subr.bf16.mxu0 0
      %305 = vmatpush1.bf16.msra.mxu0 0
      %306 = vmatprep.subr.bf16.mxu0 0
      %307 = vmatpush1.bf16.msra.mxu0 0
      %308 = vmatprep.subr.bf16.mxu0 0
      %309 = vmatpush1.bf16.msra.mxu0 0
      %310 = vmatprep.subr.bf16.mxu0 0
      %311 = vmatpush1.bf16.msra.mxu0 0
      %312 = vmatprep.subr.bf16.mxu0 0
      %313 = vmatpush1.bf16.msra.mxu0 0
      %314 = vmatprep.subr.bf16.mxu0 0
      %315 = vmatpush1.bf16.msra.mxu0 0
      %316 = vmatprep.subr.bf16.mxu0 0
      %317 = vmatpush1.bf16.msra.mxu0 0
      %318 = vmatprep.mubr.bf16.mxu0 0
      %319 = vmatmul.mubr.bf16.gmra.mrb[0].mxu0 %v274
      %v320 = vpop.f32.mrb[0].mxu0
      %v321 = vadd.f32 %v240, %v320
      %v322 = vpop.f32.mrb[0].mxu0
      %v323 = vadd.f32 %v240, %v322
      %v324 = vpop.f32.mrb[0].mxu0
      %v325 = vadd.f32 %v245, %v324
      %v326 = vpop.f32.mrb[0].mxu0
      %v327 = vadd.f32 %v245, %v326
      %328 = vmatprep.mubr.bf16.mxu0 0
      %329 = vmatmul.mubr.bf16.gmra.mrb[0].mxu0 %v277
      %v330 = vpop.f32.mrb[0].mxu0
      %v331 = vadd.f32 %v250, %v330
      %v332 = vpop.f32.mrb[0].mxu0
      %v333 = vadd.f32 %v250, %v332
      %v334 = vpop.f32.mrb[0].mxu0
      %v335 = vadd.f32 %v255, %v334
      %v336 = vpop.f32.mrb[0].mxu0
      %v337 = vadd.f32 %v255, %v336
      %338 = vdwg.mxu0
      %v339 = vmax.f32 %v321, 0.0
      %v340 = vmax.f32 %v323, 0.0
      %v341 = vmax.f32 %v325, 0.0
      %v342 = vmax.f32 %v327, 0.0
      %v343 = vmax.f32 %v331, 0.0
      %v344 = vmax.f32 %v333, 0.0
      %v345 = vmax.f32 %v335, 0.0
      %v346 = vmax.f32 %v337, 0.0
      %v347 = vld [vmem:[%s3] sm:$0xff]
      %v348 = vld [vmem:[%s3 + $0x8] sm:$0xff]
      %v349 = vld [vmem:[%s3 + $0x10] sm:$0xff]
      %v350 = vld [vmem:[%s3 + $0x18] sm:$0xff]
      %352 = vset.pattern.permute.xlu0 0
      %353 = vperm.xlu0 %352, %v347
      %v354 = vpop.permute.xlu0 %353
      %357 = vset.pattern.permute.xlu0 0
      %358 = vperm.xlu0 %357, %v348
      %v359 = vpop.permute.xlu0 %358
      %362 = vset.pattern.permute.xlu0 0
      %363 = vperm.xlu0 %362, %v349
      %v364 = vpop.permute.xlu0 %363
      %367 = vset.pattern.permute.xlu0 0
      %368 = vperm.xlu0 %367, %v350
      %v369 = vpop.permute.xlu0 %368
      %v371 = vmul.f32 %v339, %v354
      %v372 = vmul.f32 %v340, %v354
      %v373 = vmul.f32 %v341, %v359
      %v374 = vmul.f32 %v342, %v359
      %v375 = vmul.f32 %v343, %v364
      %v376 = vmul.f32 %v344, %v364
      %v377 = vmul.f32 %v345, %v369
      %v378 = vmul.f32 %v346, %v369
      %v379 = vadd.f32 %v371, %v373
      %v380 = vadd.f32 %v379, %v375
      %v381 = vadd.f32 %v380, %v377
      %v382 = vrot.slane %v381, 4
      %v383 = vadd.f32 %v381, %v382
      %v384 = vrot.slane %v383, 2
      %v385 = vadd.f32 %v383, %v384
      %v386 = vrot.slane %v385, 1
      %v387 = vadd.f32 %v385, %v386
      %v388 = vadd.f32 %v372, %v374
      %v389 = vadd.f32 %v388, %v376
      %v390 = vadd.f32 %v389, %v378
      %v391 = vrot.slane %v390, 4
      %v392 = vadd.f32 %v390, %v391
      %v393 = vrot.slane %v392, 2
      %v394 = vadd.f32 %v392, %v393
      %v395 = vrot.slane %v394, 1
      %v396 = vadd.f32 %v394, %v395
      %s397 = sld [smem:[#allocation2]]
      %v398 = vstv %s397
      %v399 = vadd.f32 %v387, %v398
      %v400 = vadd.f32 %v396, %v398
      %v401 = vxor.u32 %v399, 2147483648
      %v402 = vxor.u32 %v400, 2147483648
      %v403 = vmul.f32 %v401, 1.442695
      %v404 = vpow.pop %v403
      %v405 = vmul.f32 %v402, 1.442695
      %v406 = vpow.pop %v405
      %v407 = vadd.f32 %v404, 1.0
      %v408 = vadd.f32 %v406, 1.0
      %v409 = vrcp.pop %v407
      %v410 = vmul.f32 1.0, %v409
      %v411 = vrcp.pop %v408
      %v412 = vmul.f32 1.0, %v411
      %v415 = vcombine.low %v410, %v412
      %v417 = vunpack.c.l.s4 1966171168
      %v418 = vunpack.c.0.s8 %v417
      %v419 = vlaneseq
      %v420 = vshrl.u32 %v419, 7
      %v421 = vsub.s32 %v418, %v420
      %v422 = vrot.slane %v415, %v421
      %v424 = vunpack.c.l.s4 1966171168
      %v425 = vunpack.c.0.s8 %v424
      %v426 = vlaneseq
      %v427 = vshrl.u32 %v426, 7
      %v428 = vsub.s32 %v425, %v427
      %v429 = vrot.slane %v422, %v428
      %v431 = vlaneseq
      %vm432 = vcmp.ge.s32.totalorder %v431, 0
      %vm433 = vcmp.lt.s32.totalorder %v431, 256
      %vm434 = vmand %vm432, %vm433
      %435 = vst.msk [vmem:[%s225] sm:$0x3] %vm434, %v429
      %s436 = smul.u32 2, %s17
      %p437 = scmp.lt.s32.totalorder %s436, 3
      %s438 = scalar_select %p437, %s436, 3
      %s439 = scalar_lea.vmem %s5, %s438
      // Predicated region
      $region41: #{action_conditioned_ff.1} parent=39 // pred_check
        %p440 = pneg %p145
      $region42: #{action_conditioned_ff.1} parent=39 // pred_check_branch
        %442 = sbr.rel (%p440) target = $region44
      $region43: #{action_conditioned_ff.1} parent=39 // pred_region
        %s443 = smul.u32 2, %s17
      $region44: #{action_conditioned_ff.1} parent=39 // pred_fallthru
        _
    $region40: #{action_conditioned_ff.1} parent=5 // pred_fallthru
      _
    %p444 = scmp.le.s32.totalorder 2, %s12
    // Predicated region
    $region45: #{action_conditioned_ff.1} parent=5 // pred_check
      %p445 = pneg %p444
    $region46: #{action_conditioned_ff.1} parent=5 // pred_check_branch
      %447 = sbr.rel (%p445) target = $region48
    $region47: #{action_conditioned_ff.1} parent=5 // pred_region
      %s448 = ssub.s32 %s12, 2
      // Predicated region
      $region49: #{action_conditioned_ff.1} parent=47 // pred_check
        %p449 = pneg %p151
      $region50: #{action_conditioned_ff.1} parent=47 // pred_check_branch
        %451 = sbr.rel (%p449) target = $region52
      $region51: #{action_conditioned_ff.1} parent=47 // pred_region
        %s452 = smul.u32 2, %s18
        %p453 = scmp.lt.s32.totalorder %s452, 3
        %s454 = scalar_select %p453, %s452, 3
        %s455 = scalar_lea.vmem %s5, %s454
      $region52: #{action_conditioned_ff.1} parent=47 // pred_fallthru
        _
    $region48: #{action_conditioned_ff.1} parent=5 // pred_fallthru
      _
  $region6: #{action_conditioned_ff.1} parent=0 // loop_footer
    %s16 = sadd.s32 1, %s12
  $region7: #{action_conditioned_ff.1} parent=0 // loop_footer_branch
    %11 = sbr.rel target = $region3
  $region8: #{action_conditioned_ff.1} parent=0 // loop_exit
    _

</llo_original>
